<compile_context>
chip_gen: v5e
topology: v5e:2x2
jax: 0.10.0
libtpu: 0.0.40
codegen_flags: <defaults>
</compile_context>

<pallas_src>
import jax
import jax.numpy as jnp
from jax.experimental import pallas as pl
from jax.experimental.pallas import tpu as pltpu

_IN = 12
_H1, _H2, _H3 = 25, 30, 15
_OUT = 3
_LANE = 128      # lane-padded hidden width
_MAX_TB = 1024   # max batch tile (rows per grid step)


def _mlp_kernel(x_ref,
                w1_ref, b1_ref,
                w2_ref, b2_ref,
                w3_ref, b3_ref,
                w4_ref, b4_ref,
                o_ref):
    x = x_ref[...]

    h = jnp.dot(x, w1_ref[...], preferred_element_type=jnp.float32) + b1_ref[...]
    h = jnp.maximum(h, 0.0)

    h = jnp.dot(h, w2_ref[...], preferred_element_type=jnp.float32) + b2_ref[...]
    h = jnp.maximum(h, 0.0)

    h = jnp.dot(h, w3_ref[...], preferred_element_type=jnp.float32) + b3_ref[...]
    h = jnp.maximum(h, 0.0)

    h = jnp.dot(h, w4_ref[...], preferred_element_type=jnp.float32) + b4_ref[...]

    o_ref[...] = h.astype(o_ref.dtype)


def _pad2(a, rows, cols):
    r, c = a.shape
    if r == rows and c == cols:
        return a
    return jnp.pad(a, ((0, rows - r), (0, cols - c)))


def mlp_forward(x, params):
    """Run the 4-layer MLP forward pass in a single tiled Pallas kernel.

    x:      [B, 12] float32
    params: dict with w1..w4 ([in, out]) and b1..b4 ([1, out]) float32 arrays
            at their natural (unpadded) sizes.
    """
    B = x.shape[0]

    # Batch tile: multiple of 8 (f32 sublane), capped at _MAX_TB.
    tb = min(_MAX_TB, ((B + 7) // 8) * 8)
    b_pad = ((B + tb - 1) // tb) * tb
    x_p = jnp.pad(x, ((0, b_pad - B), (0, 0))) if b_pad != B else x

    # Zero-pad hidden dims to 128 lanes (exact: ReLU(0)=0, zero rows add 0).
    w1 = _pad2(params["w1"], _IN, _LANE)
    b1 = _pad2(params["b1"], 1, _LANE)
    w2 = _pad2(params["w2"], _LANE, _LANE)
    b2 = _pad2(params["b2"], 1, _LANE)
    w3 = _pad2(params["w3"], _LANE, _LANE)
    b3 = _pad2(params["b3"], 1, _LANE)
    w4 = _pad2(params["w4"], _LANE, _OUT)
    b4 = params["b4"]

    grid = (b_pad // tb,)

    def full(a):
        # Whole-array block, same block for every grid step -> stays in VMEM.
        return pl.BlockSpec(a.shape, lambda i: (0, 0))

    in_specs = [
        pl.BlockSpec((tb, _IN), lambda i: (i, 0)),   # x: tiled over batch
        full(w1), full(b1),
        full(w2), full(b2),
        full(w3), full(b3),
        full(w4), full(b4),
    ]
    out_specs = pl.BlockSpec((tb, _OUT), lambda i: (i, 0))

    # Advisory cost hint (padded compute; real HBM bytes dominate).
    flops = 2 * b_pad * (_IN * _LANE + _LANE * _LANE + _LANE * _LANE + _LANE * _OUT)
    weight_bytes = 4 * (_IN * _LANE + 2 * _LANE * _LANE + _LANE * _OUT
                        + 3 * _LANE + _OUT)
    bytes_accessed = 4 * b_pad * (_IN + _OUT) + weight_bytes

    out = pl.pallas_call(
        _mlp_kernel,
        out_shape=jax.ShapeDtypeStruct((b_pad, _OUT), jnp.float32),
        grid=grid,
        in_specs=in_specs,
        out_specs=out_specs,
        compiler_params=pltpu.CompilerParams(
            dimension_semantics=("parallel",)),
        cost_estimate=pl.CostEstimate(
            flops=flops, transcendentals=0, bytes_accessed=bytes_accessed),
    )(x_p, w1, b1, w2, b2, w3, b3, w4, b4)

    return out[:B] if b_pad != B else out


def init_params(key):
    """Deterministic init mimicking nn.Linear's U(-1/sqrt(fan_in), 1/sqrt(fan_in))."""
    dims = [_IN, _H1, _H2, _H3, _OUT]
    params = {}
    for i, (fan_in, fan_out) in enumerate(zip(dims[:-1], dims[1:]), start=1):
        key, kw, kb = jax.random.split(key, 3)
        bound = 1.0 / jnp.sqrt(jnp.float32(fan_in))
        # stored as [in, out] (transpose of PyTorch's [out, in])
        params[f"w{i}"] = jax.random.uniform(
            kw, (fan_in, fan_out), jnp.float32, -bound, bound)
        params[f"b{i}"] = jax.random.uniform(
            kb, (1, fan_out), jnp.float32, -bound, bound)
    return params


def reference_forward(x, params):
    h = jnp.maximum(x @ params["w1"] + params["b1"], 0.0)
    h = jnp.maximum(h @ params["w2"] + params["b2"], 0.0)
    h = jnp.maximum(h @ params["w3"] + params["b3"], 0.0)
    return h @ params["w4"] + params["b4"]


if __name__ == "__main__":
    key = jax.random.PRNGKey(0)
    key, kx1, kx2 = jax.random.split(key, 3)
    params = init_params(key)

    # Small, tile-aligned batch.
    B1 = 8
    x1 = jax.random.normal(kx1, (B1, _IN), jnp.float32)
    out1 = jax.block_until_ready(mlp_forward(x1, params))
    ref1 = reference_forward(x1, params)
    assert out1.shape == (B1, _OUT)
    assert jnp.allclose(out1, ref1, atol=1e-5, rtol=1e-5), "mismatch (B=8)"

    # Ragged batch exercising the pad-and-slice path.
    B2 = 37
    x2 = jax.random.normal(kx2, (B2, _IN), jnp.float32)
    out2 = jax.block_until_ready(mlp_forward(x2, params))
    ref2 = reference_forward(x2, params)
    assert out2.shape == (B2, _OUT)
    assert jnp.allclose(out2, ref2, atol=1e-5, rtol=1e-5), "mismatch (B=37)"

    print("KERNEL_OK")
</pallas_src>

<mosaic_0001>
module attributes {stable_mosaic.version = 11 : i64} {
  func.func @_mlp_kernel(%arg0: i32, %arg1: memref<8x12xf32, #tpu.memory_space<vmem>>, %arg2: memref<12x128xf32, #tpu.memory_space<vmem>>, %arg3: memref<1x128xf32, #tpu.memory_space<vmem>>, %arg4: memref<128x128xf32, #tpu.memory_space<vmem>>, %arg5: memref<1x128xf32, #tpu.memory_space<vmem>>, %arg6: memref<128x128xf32, #tpu.memory_space<vmem>>, %arg7: memref<1x128xf32, #tpu.memory_space<vmem>>, %arg8: memref<128x3xf32, #tpu.memory_space<vmem>>, %arg9: memref<1x3xf32, #tpu.memory_space<vmem>>, %arg10: memref<8x3xf32, #tpu.memory_space<vmem>>) attributes {dimension_semantics = [#tpu.dimension_semantics<parallel>], iteration_bounds = array<i64: 1>, scalar_prefetch = 0 : i64, scratch_operands = 0 : i64, tpu.core_type = #tpu.core_type<tc>, window_params = [{transform_indices = @transform_0, window_bounds = array<i64: 8, 12>}, {pipeline_mode = #tpu.pipeline_mode<synchronous>, transform_indices = @transform_1, window_bounds = array<i64: 12, 128>}, {pipeline_mode = #tpu.pipeline_mode<synchronous>, transform_indices = @transform_2, window_bounds = array<i64: 1, 128>}, {pipeline_mode = #tpu.pipeline_mode<synchronous>, transform_indices = @transform_3, window_bounds = array<i64: 128, 128>}, {pipeline_mode = #tpu.pipeline_mode<synchronous>, transform_indices = @transform_4, window_bounds = array<i64: 1, 128>}, {pipeline_mode = #tpu.pipeline_mode<synchronous>, transform_indices = @transform_5, window_bounds = array<i64: 128, 128>}, {pipeline_mode = #tpu.pipeline_mode<synchronous>, transform_indices = @transform_6, window_bounds = array<i64: 1, 128>}, {pipeline_mode = #tpu.pipeline_mode<synchronous>, transform_indices = @transform_7, window_bounds = array<i64: 128, 3>}, {pipeline_mode = #tpu.pipeline_mode<synchronous>, transform_indices = @transform_8, window_bounds = array<i64: 1, 3>}, {transform_indices = @transform_9, window_bounds = array<i64: 8, 3>}]} {
    %c0 = arith.constant 0 : index
    %c0_0 = arith.constant 0 : index
    %0 = vector.load %arg1[%c0, %c0_0] : memref<8x12xf32, #tpu.memory_space<vmem>>, vector<8x12xf32>
    %c0_1 = arith.constant 0 : index
    %c0_2 = arith.constant 0 : index
    %1 = vector.load %arg2[%c0_1, %c0_2] : memref<12x128xf32, #tpu.memory_space<vmem>>, vector<12x128xf32>
    %cst = arith.constant dense<0.000000e+00> : vector<8x128xf32>
    %2 = tpu.matmul %0, %1, %cst {dimension_numbers = #tpu.dot_dimension_numbers<[1], [0], [0], [1], [0, 0, 1, 1], [], []>} : vector<8x12xf32>, vector<12x128xf32>, vector<8x128xf32> -> vector<8x128xf32>
    %c0_3 = arith.constant 0 : index
    %c0_4 = arith.constant 0 : index
    %3 = vector.load %arg3[%c0_3, %c0_4] : memref<1x128xf32, #tpu.memory_space<vmem>>, vector<1x128xf32>
    %4 = vector.broadcast %3 : vector<1x128xf32> to vector<8x128xf32>
    %5 = arith.addf %2, %4 : vector<8x128xf32>
    %cst_5 = arith.constant 0.000000e+00 : f32
    %6 = vector.broadcast %cst_5 : f32 to vector<8x128xf32>
    %7 = arith.maximumf %5, %6 : vector<8x128xf32>
    %c0_6 = arith.constant 0 : index
    %c0_7 = arith.constant 0 : index
    %8 = vector.load %arg4[%c0_6, %c0_7] : memref<128x128xf32, #tpu.memory_space<vmem>>, vector<128x128xf32>
    %cst_8 = arith.constant dense<0.000000e+00> : vector<8x128xf32>
    %9 = tpu.matmul %7, %8, %cst_8 {dimension_numbers = #tpu.dot_dimension_numbers<[1], [0], [0], [1], [0, 0, 1, 1], [], []>} : vector<8x128xf32>, vector<128x128xf32>, vector<8x128xf32> -> vector<8x128xf32>
    %c0_9 = arith.constant 0 : index
    %c0_10 = arith.constant 0 : index
    %10 = vector.load %arg5[%c0_9, %c0_10] : memref<1x128xf32, #tpu.memory_space<vmem>>, vector<1x128xf32>
    %11 = vector.broadcast %10 : vector<1x128xf32> to vector<8x128xf32>
    %12 = arith.addf %9, %11 : vector<8x128xf32>
    %cst_11 = arith.constant 0.000000e+00 : f32
    %13 = vector.broadcast %cst_11 : f32 to vector<8x128xf32>
    %14 = arith.maximumf %12, %13 : vector<8x128xf32>
    %c0_12 = arith.constant 0 : index
    %c0_13 = arith.constant 0 : index
    %15 = vector.load %arg6[%c0_12, %c0_13] : memref<128x128xf32, #tpu.memory_space<vmem>>, vector<128x128xf32>
    %cst_14 = arith.constant dense<0.000000e+00> : vector<8x128xf32>
    %16 = tpu.matmul %14, %15, %cst_14 {dimension_numbers = #tpu.dot_dimension_numbers<[1], [0], [0], [1], [0, 0, 1, 1], [], []>} : vector<8x128xf32>, vector<128x128xf32>, vector<8x128xf32> -> vector<8x128xf32>
    %c0_15 = arith.constant 0 : index
    %c0_16 = arith.constant 0 : index
    %17 = vector.load %arg7[%c0_15, %c0_16] : memref<1x128xf32, #tpu.memory_space<vmem>>, vector<1x128xf32>
    %18 = vector.broadcast %17 : vector<1x128xf32> to vector<8x128xf32>
    %19 = arith.addf %16, %18 : vector<8x128xf32>
    %cst_17 = arith.constant 0.000000e+00 : f32
    %20 = vector.broadcast %cst_17 : f32 to vector<8x128xf32>
    %21 = arith.maximumf %19, %20 : vector<8x128xf32>
    %c0_18 = arith.constant 0 : index
    %c0_19 = arith.constant 0 : index
    %22 = vector.load %arg8[%c0_18, %c0_19] : memref<128x3xf32, #tpu.memory_space<vmem>>, vector<128x3xf32>
    %cst_20 = arith.constant dense<0.000000e+00> : vector<8x3xf32>
    %23 = tpu.matmul %21, %22, %cst_20 {dimension_numbers = #tpu.dot_dimension_numbers<[1], [0], [0], [1], [0, 0, 1, 1], [], []>} : vector<8x128xf32>, vector<128x3xf32>, vector<8x3xf32> -> vector<8x3xf32>
    %c0_21 = arith.constant 0 : index
    %c0_22 = arith.constant 0 : index
    %24 = vector.load %arg9[%c0_21, %c0_22] : memref<1x3xf32, #tpu.memory_space<vmem>>, vector<1x3xf32>
    %25 = vector.broadcast %24 : vector<1x3xf32> to vector<8x3xf32>
    %26 = arith.addf %23, %25 : vector<8x3xf32>
    %c0_23 = arith.constant 0 : index
    %c0_24 = arith.constant 0 : index
    %27 = vector.load %arg10[%c0_23, %c0_24] : memref<8x3xf32, #tpu.memory_space<vmem>>, vector<8x3xf32>
    tpu.vector_store %arg10[%c0_23, %c0_24], %26 {strides = array<i32>} : memref<8x3xf32, #tpu.memory_space<vmem>>, vector<8x3xf32>,
    return
  }
  func.func @transform_0(%arg0: i32) -> (i32, i32) {
    %c0_i32 = arith.constant 0 : i32
    %c0_i32_0 = arith.constant 0 : i32
    return %arg0, %c0_i32 : i32, i32
  }
  func.func @transform_1(%arg0: i32) -> (i32, i32) {
    %c0_i32 = arith.constant 0 : i32
    %c0_i32_0 = arith.constant 0 : i32
    %c0_i32_1 = arith.constant 0 : i32
    return %c0_i32, %c0_i32_0 : i32, i32
  }
  func.func @transform_2(%arg0: i32) -> (i32, i32) {
    %c0_i32 = arith.constant 0 : i32
    %c0_i32_0 = arith.constant 0 : i32
    %c0_i32_1 = arith.constant 0 : i32
    return %c0_i32, %c0_i32_0 : i32, i32
  }
  func.func @transform_3(%arg0: i32) -> (i32, i32) {
    %c0_i32 = arith.constant 0 : i32
    %c0_i32_0 = arith.constant 0 : i32
    %c0_i32_1 = arith.constant 0 : i32
    return %c0_i32, %c0_i32_0 : i32, i32
  }
  func.func @transform_4(%arg0: i32) -> (i32, i32) {
    %c0_i32 = arith.constant 0 : i32
    %c0_i32_0 = arith.constant 0 : i32
    %c0_i32_1 = arith.constant 0 : i32
    return %c0_i32, %c0_i32_0 : i32, i32
  }
  func.func @transform_5(%arg0: i32) -> (i32, i32) {
    %c0_i32 = arith.constant 0 : i32
    %c0_i32_0 = arith.constant 0 : i32
    %c0_i32_1 = arith.constant 0 : i32
    return %c0_i32, %c0_i32_0 : i32, i32
  }
  func.func @transform_6(%arg0: i32) -> (i32, i32) {
    %c0_i32 = arith.constant 0 : i32
    %c0_i32_0 = arith.constant 0 : i32
    %c0_i32_1 = arith.constant 0 : i32
    return %c0_i32, %c0_i32_0 : i32, i32
  }
  func.func @transform_7(%arg0: i32) -> (i32, i32) {
    %c0_i32 = arith.constant 0 : i32
    %c0_i32_0 = arith.constant 0 : i32
    %c0_i32_1 = arith.constant 0 : i32
    return %c0_i32, %c0_i32_0 : i32, i32
  }
  func.func @transform_8(%arg0: i32) -> (i32, i32) {
    %c0_i32 = arith.constant 0 : i32
    %c0_i32_0 = arith.constant 0 : i32
    %c0_i32_1 = arith.constant 0 : i32
    return %c0_i32, %c0_i32_0 : i32, i32
  }
  func.func @transform_9(%arg0: i32) -> (i32, i32) {
    %c0_i32 = arith.constant 0 : i32
    %c0_i32_0 = arith.constant 0 : i32
    return %arg0, %c0_i32 : i32, i32
  }
}

</mosaic_0001>

<llo_original>
// kernel: tpu_custom_call.1
$region0: #{tpu_custom_call.1}
  #allocation0 [shape = 'u32[]', space=smem, size = 0x4, offset = 0x4, fixed_abs, tag = 'smem constant byte address 0x4 - core index']
  #allocation1 [shape = 'u32[72,128]{1,0:T(1,128)}', space=vmem, size = 0x9000, scoped, tag = 'internal scratch']
  %s0 = inlined_call_operand.hbm [shape: f32[8,12], index: 0, kind: input, shape index: {}]
  %s1 = inlined_call_operand.hbm [shape: f32[12,128], index: 1, kind: input, shape index: {}]
  %s2 = inlined_call_operand.vmem [shape: f32[1,128], index: 2, kind: input, shape index: {}]
  %s3 = inlined_call_operand.vmem [shape: f32[128,128], index: 3, kind: input, shape index: {}]
  %s4 = inlined_call_operand.vmem [shape: f32[1,128], index: 4, kind: input, shape index: {}]
  %s5 = inlined_call_operand.hbm [shape: f32[128,128], index: 5, kind: input, shape index: {}]
  %s6 = inlined_call_operand.vmem [shape: f32[1,128], index: 6, kind: input, shape index: {}]
  %s7 = inlined_call_operand.vmem [shape: f32[128,3], index: 7, kind: input, shape index: {}]
  %s8 = inlined_call_operand.vmem [shape: f32[1,3], index: 8, kind: input, shape index: {}]
  %s9 = inlined_call_operand.vmem [shape: f32[8,3], index: 9, kind: output, shape index: {}]
  %s10 = sld [smem:[#allocation0]]
  $region58: #{tpu_custom_call.1} parent=0
    _
  %s12 = ssub.s32 1, %s10
  %s13 = scalar_select 0, %s12, %s10
  $region1: #{tpu_custom_call.1} parent=0
    #allocation2 [shape = 'u8[4096]{0}', space=vmem, size = 0x1000, scoped, tag = 'input window, operand 0, single buffered']
    #allocation3 [shape = 's32[1]{0}', space=sflag, size = 0x4, scoped, tag = 'scoped memory for tpu_custom_call.1']
    #allocation4 [shape = 'u8[8192]{0}', space=vmem, size = 0x2000, scoped, tag = 'input window, operand 1, single buffered']
    #allocation5 [shape = 's32[1]{0}', space=sflag, size = 0x4, scoped, tag = 'scoped memory for tpu_custom_call.1']
    #allocation6 [shape = 'u8[65536]{0}', space=vmem, size = 0x10000, scoped, tag = 'input window, operand 5, single buffered']
    %14 = vsyncpa [#allocation3], 0
    %15 = vsyncpa [#allocation5], 0
    // Predicated region
    $region2: #{tpu_custom_call.1} parent=1 // pred_check
      _
    $region3: #{tpu_custom_call.1} parent=1 // pred_check_branch
      %17 = sbr.rel (0) target = $region5
    $region4: #{tpu_custom_call.1} parent=1 // pred_region
      %19 = vsyncadd [#allocation3], 0
      %s21 = sshll.u32 %s0, 4
      %s22 = int_to_ptr.hbm [resolvable:$true] %s21
      %s23 = sshll.u32 [#allocation2], 4
      %s24 = int_to_ptr.vmem [resolvable:$true] %s23
      %26 = dma.hbm_to_vmem [thread:$0]  %s22, 128, %s24, [#allocation3]
    $region5: #{tpu_custom_call.1} parent=1 // pred_fallthru
      _
    // Predicated region
    $region6: #{tpu_custom_call.1} parent=1 // pred_check
      _
    $region7: #{tpu_custom_call.1} parent=1 // pred_check_branch
      %28 = sbr.rel (0) target = $region9
    $region8: #{tpu_custom_call.1} parent=1 // pred_region
      %30 = vsyncadd [#allocation5], 0
      %s31 = sshll.u32 %s1, 4
      %s32 = int_to_ptr.hbm [resolvable:$true] %s31
      %s33 = sshll.u32 [#allocation4], 4
      %s34 = int_to_ptr.vmem [resolvable:$true] %s33
      %39 = dma.hbm_to_vmem [thread:$0]  %s32, 256, %s34, [#allocation5], 128, 128, 8
    $region9: #{tpu_custom_call.1} parent=1 // pred_fallthru
      _
    // Predicated region
    $region10: #{tpu_custom_call.1} parent=1 // pred_check
      _
    $region11: #{tpu_custom_call.1} parent=1 // pred_check_branch
      %41 = sbr.rel (0) target = $region13
    $region12: #{tpu_custom_call.1} parent=1 // pred_region
      _
    $region13: #{tpu_custom_call.1} parent=1 // pred_fallthru
      _
    // Predicated region
    $region14: #{tpu_custom_call.1} parent=1 // pred_check
      _
    $region15: #{tpu_custom_call.1} parent=1 // pred_check_branch
      %43 = sbr.rel (0) target = $region17
    $region16: #{tpu_custom_call.1} parent=1 // pred_region
      _
    $region17: #{tpu_custom_call.1} parent=1 // pred_fallthru
      _
    // Predicated region
    $region18: #{tpu_custom_call.1} parent=1 // pred_check
      _
    $region19: #{tpu_custom_call.1} parent=1 // pred_check_branch
      %45 = sbr.rel (0) target = $region21
    $region20: #{tpu_custom_call.1} parent=1 // pred_region
      _
    $region21: #{tpu_custom_call.1} parent=1 // pred_fallthru
      _
    // Predicated region
    $region22: #{tpu_custom_call.1} parent=1 // pred_check
      _
    $region23: #{tpu_custom_call.1} parent=1 // pred_check_branch
      %47 = sbr.rel (0) target = $region25
    $region24: #{tpu_custom_call.1} parent=1 // pred_region
      %49 = vsyncadd [#allocation5], 0
      %s50 = sshll.u32 %s5, 4
      %s51 = int_to_ptr.hbm [resolvable:$true] %s50
      %s52 = sshll.u32 [#allocation6], 4
      %s53 = int_to_ptr.vmem [resolvable:$true] %s52
      %58 = dma.hbm_to_vmem [thread:$0]  %s51, 2048, %s53, [#allocation5], 128, 128, 8
    $region25: #{tpu_custom_call.1} parent=1 // pred_fallthru
      _
    // Predicated region
    $region26: #{tpu_custom_call.1} parent=1 // pred_check
      _
    $region27: #{tpu_custom_call.1} parent=1 // pred_check_branch
      %60 = sbr.rel (0) target = $region29
    $region28: #{tpu_custom_call.1} parent=1 // pred_region
      _
    $region29: #{tpu_custom_call.1} parent=1 // pred_fallthru
      _
    // Predicated region
    $region30: #{tpu_custom_call.1} parent=1 // pred_check
      _
    $region31: #{tpu_custom_call.1} parent=1 // pred_check_branch
      %62 = sbr.rel (0) target = $region33
    $region32: #{tpu_custom_call.1} parent=1 // pred_region
      _
    $region33: #{tpu_custom_call.1} parent=1 // pred_fallthru
      _
    // Predicated region
    $region34: #{tpu_custom_call.1} parent=1 // pred_check
      _
    $region35: #{tpu_custom_call.1} parent=1 // pred_check_branch
      %64 = sbr.rel (0) target = $region37
    $region36: #{tpu_custom_call.1} parent=1 // pred_region
      _
    $region37: #{tpu_custom_call.1} parent=1 // pred_fallthru
      _
    // Predicated region
    $region38: #{tpu_custom_call.1} parent=1 // pred_check
      _
    $region39: #{tpu_custom_call.1} parent=1 // pred_check_branch
      %66 = sbr.rel (0) target = $region41
    $region40: #{tpu_custom_call.1} parent=1 // pred_region
      %68 = dma.done [#allocation3], 128
    $region41: #{tpu_custom_call.1} parent=1 // pred_fallthru
      _
    // Predicated region
    $region42: #{tpu_custom_call.1} parent=1 // pred_check
      _
    $region43: #{tpu_custom_call.1} parent=1 // pred_check_branch
      %70 = sbr.rel (0) target = $region45
    $region44: #{tpu_custom_call.1} parent=1 // pred_region
      %72 = dma.done [#allocation5], 256
    $region45: #{tpu_custom_call.1} parent=1 // pred_fallthru
      _
    // Predicated region
    $region46: #{tpu_custom_call.1} parent=1 // pred_check
      _
    $region47: #{tpu_custom_call.1} parent=1 // pred_check_branch
      %74 = sbr.rel (0) target = $region49
    $region48: #{tpu_custom_call.1} parent=1 // pred_region
      %76 = dma.done [#allocation5], 2048
    $region49: #{tpu_custom_call.1} parent=1 // pred_fallthru
      _
    %v77 = vld [vmem:[#allocation2] sm:$0xff]
    %v78 = vld [vmem:[#allocation4] sm:$0xff]
    %v79 = vld [vmem:[#allocation4 + $0x8] sm:$0xf]
    %v80 = vld [vmem:[%s2] sm:$0x1]
    %v82 = vperm.slane %v80, 0
    %vm84 = vcmask 97280
    %v86 = vsel %vm84, %v77, 0
    %vm88 = vcmask 1043456
    %v90 = vsel %vm88, %v79, 0
    %92 = vmatpush.msra.mxu0 0.0
    %93 = vmatpush.msra.mxu0 0.0
    %94 = vmatpush.msra.mxu0 0.0
    %95 = vmatpush.msra.mxu0 0.0
    %96 = vmatpush.msra.mxu0 0.0
    %97 = vmatpush.msra.mxu0 0.0
    %98 = vmatpush.msra.mxu0 0.0
    %99 = vmatpush.msra.mxu0 0.0
    %100 = vmatpush.msra.mxu0 0.0
    %101 = vmatpush.msra.mxu0 0.0
    %102 = vmatpush.msra.mxu0 0.0
    %103 = vmatpush.msra.mxu0 0.0
    %104 = vmatpush.msra.mxu0 0.0
    %105 = vmatpush.msra.mxu0 0.0
    %106 = vmatpush.msra.mxu0 %v90
    %107 = vmatpush.msra.mxu0 %v78
    %108 = vmatmul.f32.gmra.mxu0 %v86
    %v109 = vpop.f32.mrf.mxu0
    %v110 = vadd.f32 %v82, %v109
    %111 = vdwg.mxu0
    %v112 = vmax.f32 %v110, 0.0
    %v113 = vld [vmem:[%s3] sm:$0xff]
    %v114 = vld [vmem:[%s3 + $0x8] sm:$0xff]
    %v115 = vld [vmem:[%s3 + $0x10] sm:$0xff]
    %v116 = vld [vmem:[%s3 + $0x18] sm:$0xff]
    %v117 = vld [vmem:[%s3 + $0x20] sm:$0xff]
    %v118 = vld [vmem:[%s3 + $0x28] sm:$0xff]
    %v119 = vld [vmem:[%s3 + $0x30] sm:$0xff]
    %v120 = vld [vmem:[%s3 + $0x38] sm:$0xff]
    %v121 = vld [vmem:[%s3 + $0x40] sm:$0xff]
    %v122 = vld [vmem:[%s3 + $0x48] sm:$0xff]
    %v123 = vld [vmem:[%s3 + $0x50] sm:$0xff]
    %v124 = vld [vmem:[%s3 + $0x58] sm:$0xff]
    %v125 = vld [vmem:[%s3 + $0x60] sm:$0xff]
    %v126 = vld [vmem:[%s3 + $0x68] sm:$0xff]
    %v127 = vld [vmem:[%s3 + $0x70] sm:$0xff]
    %v128 = vld [vmem:[%s3 + $0x78] sm:$0xff]
    %v129 = vld [vmem:[%s4] sm:$0x1]
    %v131 = vperm.slane %v129, 0
    %133 = vmatpush.msra.mxu0 %v128
    %134 = vmatpush.msra.mxu0 %v127
    %135 = vmatpush.msra.mxu0 %v126
    %136 = vmatpush.msra.mxu0 %v125
    %137 = vmatpush.msra.mxu0 %v124
    %138 = vmatpush.msra.mxu0 %v123
    %139 = vmatpush.msra.mxu0 %v122
    %140 = vmatpush.msra.mxu0 %v121
    %141 = vmatpush.msra.mxu0 %v120
    %142 = vmatpush.msra.mxu0 %v119
    %143 = vmatpush.msra.mxu0 %v118
    %144 = vmatpush.msra.mxu0 %v117
    %145 = vmatpush.msra.mxu0 %v116
    %146 = vmatpush.msra.mxu0 %v115
    %147 = vmatpush.msra.mxu0 %v114
    %148 = vmatpush.msra.mxu0 %v113
    %149 = vmatmul.f32.gmra.mxu0 %v112
    %v150 = vpop.f32.mrf.mxu0
    %v151 = vadd.f32 %v131, %v150
    %152 = vdwg.mxu0
    %v153 = vmax.f32 %v151, 0.0
    %v154 = vld [vmem:[#allocation6] sm:$0xff]
    %v155 = vld [vmem:[#allocation6 + $0x8] sm:$0xff]
    %v156 = vld [vmem:[#allocation6 + $0x10] sm:$0xff]
    %v157 = vld [vmem:[#allocation6 + $0x18] sm:$0xff]
    %v158 = vld [vmem:[#allocation6 + $0x20] sm:$0xff]
    %v159 = vld [vmem:[#allocation6 + $0x28] sm:$0xff]
    %v160 = vld [vmem:[#allocation6 + $0x30] sm:$0xff]
    %v161 = vld [vmem:[#allocation6 + $0x38] sm:$0xff]
    %v162 = vld [vmem:[#allocation6 + $0x40] sm:$0xff]
    %v163 = vld [vmem:[#allocation6 + $0x48] sm:$0xff]
    %v164 = vld [vmem:[#allocation6 + $0x50] sm:$0xff]
    %v165 = vld [vmem:[#allocation6 + $0x58] sm:$0xff]
    %v166 = vld [vmem:[#allocation6 + $0x60] sm:$0xff]
    %v167 = vld [vmem:[#allocation6 + $0x68] sm:$0xff]
    %v168 = vld [vmem:[#allocation6 + $0x70] sm:$0xff]
    %v169 = vld [vmem:[#allocation6 + $0x78] sm:$0xff]
    %v170 = vld [vmem:[%s6] sm:$0x1]
    %v172 = vperm.slane %v170, 0
    %174 = vmatpush.msra.mxu0 %v169
    %175 = vmatpush.msra.mxu0 %v168
    %176 = vmatpush.msra.mxu0 %v167
    %177 = vmatpush.msra.mxu0 %v166
    %178 = vmatpush.msra.mxu0 %v165
    %179 = vmatpush.msra.mxu0 %v164
    %180 = vmatpush.msra.mxu0 %v163
    %181 = vmatpush.msra.mxu0 %v162
    %182 = vmatpush.msra.mxu0 %v161
    %183 = vmatpush.msra.mxu0 %v160
    %184 = vmatpush.msra.mxu0 %v159
    %185 = vmatpush.msra.mxu0 %v158
    %186 = vmatpush.msra.mxu0 %v157
    %187 = vmatpush.msra.mxu0 %v156
    %188 = vmatpush.msra.mxu0 %v155
    %189 = vmatpush.msra.mxu0 %v154
    %190 = vmatmul.f32.gmra.mxu0 %v153
    %v191 = vpop.f32.mrf.mxu0
    %v192 = vadd.f32 %v172, %v191
    %193 = vdwg.mxu0
    %v194 = vmax.f32 %v192, 0.0
    %v195 = vld [vmem:[%s7] sm:$0xff]
    %v196 = vld [vmem:[%s7 + $0x8] sm:$0xff]
    %v197 = vld [vmem:[%s7 + $0x10] sm:$0xff]
    %v198 = vld [vmem:[%s7 + $0x18] sm:$0xff]
    %v199 = vld [vmem:[%s7 + $0x20] sm:$0xff]
    %v200 = vld [vmem:[%s7 + $0x28] sm:$0xff]
    %v201 = vld [vmem:[%s7 + $0x30] sm:$0xff]
    %v202 = vld [vmem:[%s7 + $0x38] sm:$0xff]
    %v203 = vld [vmem:[%s7 + $0x40] sm:$0xff]
    %v204 = vld [vmem:[%s7 + $0x48] sm:$0xff]
    %v205 = vld [vmem:[%s7 + $0x50] sm:$0xff]
    %v206 = vld [vmem:[%s7 + $0x58] sm:$0xff]
    %v207 = vld [vmem:[%s7 + $0x60] sm:$0xff]
    %v208 = vld [vmem:[%s7 + $0x68] sm:$0xff]
    %v209 = vld [vmem:[%s7 + $0x70] sm:$0xff]
    %v210 = vld [vmem:[%s7 + $0x78] sm:$0xff]
    %v211 = vld [vmem:[%s8] sm:$0x1]
    %v213 = vperm.slane %v211, 0
    %215 = vmatpush.msra.mxu0 %v210
    %216 = vmatpush.msra.mxu0 %v209
    %217 = vmatpush.msra.mxu0 %v208
    %218 = vmatpush.msra.mxu0 %v207
    %219 = vmatpush.msra.mxu0 %v206
    %220 = vmatpush.msra.mxu0 %v205
    %221 = vmatpush.msra.mxu0 %v204
    %222 = vmatpush.msra.mxu0 %v203
    %223 = vmatpush.msra.mxu0 %v202
    %224 = vmatpush.msra.mxu0 %v201
    %225 = vmatpush.msra.mxu0 %v200
    %226 = vmatpush.msra.mxu0 %v199
    %227 = vmatpush.msra.mxu0 %v198
    %228 = vmatpush.msra.mxu0 %v197
    %229 = vmatpush.msra.mxu0 %v196
    %230 = vmatpush.msra.mxu0 %v195
    %231 = vmatmul.f32.gmra.mxu0 %v194
    %v232 = vpop.f32.mrf.mxu0
    %v233 = vadd.f32 %v213, %v232
    %234 = vdwg.mxu0
    %vm235 = vcmask 23552
    %236 = vst.msk [vmem:[%s9] sm:$0xff] %vm235, %v233
    // Predicated region
    $region50: #{tpu_custom_call.1} parent=1 // pred_check
      _
    $region51: #{tpu_custom_call.1} parent=1 // pred_check_branch
      %238 = sbr.rel (0) target = $region53
    $region52: #{tpu_custom_call.1} parent=1 // pred_region
      _
    $region53: #{tpu_custom_call.1} parent=1 // pred_fallthru
      _
    // Predicated region
    $region54: #{tpu_custom_call.1} parent=1 // pred_check
      _
    $region55: #{tpu_custom_call.1} parent=1 // pred_check_branch
      %240 = sbr.rel (0) target = $region57
    $region56: #{tpu_custom_call.1} parent=1 // pred_region
      _
    $region57: #{tpu_custom_call.1} parent=1 // pred_fallthru
      _
    %241 = vsyncpa [#allocation3], 1
    %242 = vsyncpa [#allocation5], 1

</llo_original>
